<compile_context>
chip_gen: v6e
topology: v6e:2x2x1
jax: 0.10.0
libtpu: 0.0.40
codegen_flags: <defaults>
</compile_context>

<pallas_src>
import jax
import jax.numpy as jnp
from jax.experimental import pallas as pl
from jax.experimental.pallas import tpu as pltpu

# ---- synthetic config (small) ------------------------------------------------
BATCH = 64                  # 64 images x 4 tokens -> 256 rows (>=128-row tiles)
IN_CH = 3
IMG = 16
PATCH = 4
HIDDEN = 32                 # backbone_config.hidden_size
HIDDEN_STRIDE = 2           # config.hidden_stride
VOCAB = 69                  # config.vocab_size
NUM_INDICATORS = 5          # len(IMAGE_INDICATOR_IDS)
HEAD_DIM = VOCAB - NUM_INDICATORS   # 64
LN_EPS = 1e-5
DROP_CLS_TOKEN = True
TOKENIZE_FUNCTION = "softmax"       # config.tokenize_function

HS2 = HIDDEN_STRIDE * HIDDEN_STRIDE          # patches per output token
PATCH_DIM = IN_CH * PATCH * PATCH            # 48  pixels per patch
GROUP_DIM = HS2 * PATCH_DIM                  # 192 pixels feeding one token
HEAD_IN = HS2 * HIDDEN                       # 128 head input dim
OUT_PAD = ((VOCAB + 127) // 128) * 128       # 128 lane-dense output slab
NEG_BIG = -1e30                              # masked-lane logit (exp -> 0)
ROW_TILE = 128                               # M tile (>=128; 256 also fine on v6e/v7x)


def _round_up(x, m):
    return (x + m - 1) // m * m


# ---- fused Pallas kernel -----------------------------------------------------
def _fused_tokenizer_kernel(x_ref, w_ref, b_ref, g_ref, beta_ref, o_ref):
    """Fused (patch-embed∘regroup∘head) matmul + LayerNorm + softmax + pad.

    x_ref:   (TM, GROUP_DIM)     f32   grouped patch pixels (regroup row order)
    w_ref:   (GROUP_DIM, OUT_PAD) bf16 pre-fused weight (zero cols >= HEAD_DIM)
    b_ref:   (1, OUT_PAD)        f32   pre-fused bias    (zero for pad lanes)
    g_ref:   (1, OUT_PAD)        f32   LayerNorm gamma   (pad lanes unused)
    beta_ref:(1, OUT_PAD)        f32   LayerNorm beta    (pad lanes unused)
    o_ref:   (TM, OUT_PAD)       bf16  softmax probs; lanes >= HEAD_DIM are zero
    """
    # Single MXU matmul: patch-embed, hidden_stride regroup and head linear are
    # all baked into w_ref at load time. bf16 cast hides under the matmul.
    x = x_ref[...].astype(jnp.bfloat16)
    logits = jnp.dot(x, w_ref[...],
                     preferred_element_type=jnp.float32) + b_ref[...]

    # Only the first HEAD_DIM lanes are real; the rest hit zero weight columns.
    lane = jax.lax.broadcasted_iota(jnp.int32, logits.shape, 1)
    valid = lane < HEAD_DIM

    # LayerNorm over the HEAD_DIM valid lanes (biased variance, eps in rsqrt).
    logits_m = jnp.where(valid, logits, 0.0)
    mean = jnp.sum(logits_m, axis=-1, keepdims=True) * (1.0 / HEAD_DIM)
    centered = logits - mean
    var = jnp.sum(jnp.where(valid, centered * centered, 0.0),
                  axis=-1, keepdims=True) * (1.0 / HEAD_DIM)
    ln = centered * jax.lax.rsqrt(var + LN_EPS) * g_ref[...] + beta_ref[...]

    # Masked softmax: padded lanes -> exp(~-inf) = 0.0 exactly (f32), which also
    # implements the IMAGE_INDICATOR zero padding in-kernel.
    ln = jnp.where(valid, ln, NEG_BIG)
    m = jnp.max(ln, axis=-1, keepdims=True)
    e = jnp.exp(ln - m)
    denom = jnp.sum(e, axis=-1, keepdims=True)
    o_ref[...] = (e * pl.reciprocal(denom, approx=True)).astype(o_ref.dtype)


def fused_visual_tokenizer(xg, w_fused, b_fused, gamma, beta,
                           *, tm=ROW_TILE, out_dtype=jnp.bfloat16):
    """xg: [B*T, GROUP_DIM] f32 -> probs slab [B*T, OUT_PAD] bf16."""
    BT, K = xg.shape
    tm = min(tm, _round_up(BT, 8))          # clamp tile to (sublane-rounded) rows
    bt_pad = _round_up(BT, tm)
    if bt_pad != BT:
        xg = jnp.pad(xg, ((0, bt_pad - BT), (0, 0)))
    grid = (bt_pad // tm,)

    probs = pl.pallas_call(
        _fused_tokenizer_kernel,
        out_shape=jax.ShapeDtypeStruct((bt_pad, OUT_PAD), out_dtype),
        grid_spec=pltpu.PrefetchScalarGridSpec(
            num_scalar_prefetch=0,
            grid=grid,                                  # row-tile axis over B*T
            in_specs=[
                # activations stream per 128-row tile
                pl.BlockSpec((tm, K), lambda i: (i, 0)),
                # weights / LN params: constant index_map -> VMEM-resident
                pl.BlockSpec(w_fused.shape, lambda i: (0, 0)),
                pl.BlockSpec(b_fused.shape, lambda i: (0, 0)),
                pl.BlockSpec(gamma.shape, lambda i: (0, 0)),
                pl.BlockSpec(beta.shape, lambda i: (0, 0)),
            ],
            out_specs=pl.BlockSpec((tm, OUT_PAD), lambda i: (i, 0)),
        ),
        compiler_params=pltpu.CompilerParams(
            dimension_semantics=("parallel",),          # rows independent; v7x 2-TC
            vmem_limit_bytes=32 * 1024 * 1024),
    )(xg, w_fused, b_fused, gamma, beta)
    return probs[:BT]


# ---- plain-JAX glue (layout plumbing only) -----------------------------------
def nchw_to_grouped_patches(x):
    """[B, C, H, W] -> [B*T, hs*hs*C*ps*ps] f32.

    Rows are tokens (the hidden_stride regroup of VisualTokenizer.encode);
    within a row the hs*hs patches of the token appear row-major, each as a
    (C, ps, ps)-ordered pixel vector — matching the kron(I_hs2, pe_w) layout.
    """
    B, C, H, W = x.shape
    ps, hs = PATCH, HIDDEN_STRIDE
    gh, gw = H // ps, W // ps
    # TODO(synk): generic path pads the patch grid when sqrt(L) % hs != 0;
    #             not needed at these shapes.
    assert gh % hs == 0 and gw % hs == 0
    th, tw = gh // hs, gw // hs
    x = x.reshape(B, C, th, hs, ps, tw, hs, ps)       # (B, C, ti, a, ph, tj, b, pw)
    x = jnp.transpose(x, (0, 2, 5, 3, 6, 1, 4, 7))    # (B, ti, tj, a, b, C, ph, pw)
    return x.reshape(B * th * tw, hs * hs * C * ps * ps)


def prepare_params(params):
    """One-time weight re-layout + matmul pre-fusion (done at load time)."""
    pe_w = params["pe_w"].astype(jnp.float32)                 # (48, 32)
    # Block-diagonal patch-embed weight implements the hidden_stride regroup.
    w1 = jnp.kron(jnp.eye(HS2, dtype=jnp.float32), pe_w)      # (192, 128)
    b1 = jnp.tile(params["pe_b"].astype(jnp.float32), (1, HS2))   # (1, 128)
    w2 = jnp.pad(params["head_w"].astype(jnp.float32),
                 ((0, 0), (0, OUT_PAD - HEAD_DIM)))            # (128, 128), 0-cols
    # Pre-fuse the two linear stages (legal while the backbone stand-in is
    # linear): one dense (192, 128) weight, no structurally wasted FLOPs.
    w_fused = w1 @ w2                                          # (192, 128)
    b_fused = b1 @ w2                                          # (1, 128), 0 on pad lanes
    gamma = jnp.pad(params["ln_gamma"],
                    ((0, 0), (0, OUT_PAD - HEAD_DIM)), constant_values=1.0)
    beta = jnp.pad(params["ln_beta"], ((0, 0), (0, OUT_PAD - HEAD_DIM)))
    return {
        "w_fused": w_fused.astype(jnp.bfloat16),   # TODO(synk): fp8 on v7x at scale
        "b_fused": b_fused.astype(jnp.float32),
        "ln_gamma": gamma.astype(jnp.float32),
        "ln_beta": beta.astype(jnp.float32),
    }


@jax.jit
def visual_tokenizer_forward(pixel_values, prep):
    """[B, C, H, W] (NCHW) -> [B, T, VOCAB]."""
    B = pixel_values.shape[0]
    xg = nchw_to_grouped_patches(pixel_values)                 # (B*T, 192) f32
    probs = fused_visual_tokenizer(xg, prep["w_fused"], prep["b_fused"],
                                   prep["ln_gamma"], prep["ln_beta"])  # (B*T, 128)
    T = xg.shape[0] // B
    # Lanes >= HEAD_DIM are exact zeros (masked softmax) -> the VOCAB slice
    # already contains the NUM_INDICATORS zero slots.
    return probs.reshape(B, T, OUT_PAD)[..., :VOCAB]


# ---- deterministic parameter init --------------------------------------------
def init_params(key):
    k1, k2 = jax.random.split(key, 2)
    return {
        "pe_w": jax.random.normal(k1, (PATCH_DIM, HIDDEN), jnp.float32) * 0.02,
        "pe_b": jnp.zeros((1, HIDDEN), jnp.float32),
        "head_w": jax.random.normal(k2, (HEAD_IN, HEAD_DIM), jnp.float32) * 0.02,
        "ln_gamma": jnp.ones((1, HEAD_DIM), jnp.float32),
        "ln_beta": jnp.zeros((1, HEAD_DIM), jnp.float32),
    }


# ---- pure-JAX unfused reference (mirrors the PyTorch module stage-by-stage) --
def reference_forward(pixel_values, params):
    B, C, H, W = pixel_values.shape
    ps, hs = PATCH, HIDDEN_STRIDE
    gh, gw = H // ps, W // ps
    # backbone stand-in: per-patch linear projection, patches row-major.
    x = pixel_values.reshape(B, C, gh, ps, gw, ps)
    x = jnp.transpose(x, (0, 2, 4, 1, 3, 5)).reshape(B, gh * gw, C * ps * ps)
    feats = x @ params["pe_w"] + params["pe_b"]                  # (B, L, HIDDEN)
    # drop_cls_token: stand-in produces no CLS token -> nothing to drop.
    n, L, d = feats.shape
    sqrt_l = int(L ** 0.5)
    assert sqrt_l * sqrt_l == L
    feats = feats.reshape(n, sqrt_l, sqrt_l, d)
    feats = feats.reshape(n, sqrt_l // hs, hs, sqrt_l // hs, hs, d)
    feats = jnp.transpose(feats, (0, 1, 3, 2, 4, 5))             # permute(0,1,3,2,4,5)
    feats = feats.reshape(n, (sqrt_l // hs) ** 2, hs * hs * d)
    logits = feats @ params["head_w"]                            # head Linear (no bias)
    mu = logits.mean(-1, keepdims=True)
    var = ((logits - mu) ** 2).mean(-1, keepdims=True)
    ln = (logits - mu) * jax.lax.rsqrt(var + LN_EPS) * params["ln_gamma"] \
        + params["ln_beta"]
    probs = jax.nn.softmax(ln, axis=-1)                          # tokenize='softmax'
    return jnp.pad(probs, ((0, 0), (0, 0), (0, NUM_INDICATORS)))


if __name__ == "__main__":
    key = jax.random.PRNGKey(0)
    pkey, xkey = jax.random.split(key)
    params = init_params(pkey)
    prep = prepare_params(params)   # one-time weight re-layout + pre-fusion
    pixel_values = jax.random.normal(xkey, (BATCH, IN_CH, IMG, IMG), jnp.float32)

    out = visual_tokenizer_forward(pixel_values, prep)
    out = jax.block_until_ready(out)

    # sanity: shape [B, T, VOCAB]; softmax rows ~sum to 1 (approx reciprocal +
    # bf16 MXU operands + bf16 output); indicator slots exactly zero.
    T = ((IMG // PATCH) // HIDDEN_STRIDE) ** 2
    assert out.shape == (BATCH, T, VOCAB), out.shape
    row_sums = out[..., :HEAD_DIM].astype(jnp.float32).sum(-1)
    assert jnp.allclose(row_sums, 1.0, atol=1e-2)
    assert jnp.all(out[..., HEAD_DIM:] == 0.0)

    # cross-check the fused kernel (kron regroup order + load-time matmul
    # fusion) against the unfused pure-JAX f32 reference.
    ref = reference_forward(pixel_values, params)
    max_err = float(jnp.max(jnp.abs(out.astype(jnp.float32) - ref)))
    assert max_err < 2e-2, max_err

    print("KERNEL_OK")
</pallas_src>

<mosaic_0001>
module attributes {stable_mosaic.version = 11 : i64} {
  func.func @_fused_tokenizer_kernel(%arg0: i32, %arg1: memref<128x192xf32, #tpu.memory_space<vmem>>, %arg2: memref<192x128xbf16, #tpu.memory_space<vmem>>, %arg3: memref<1x128xf32, #tpu.memory_space<vmem>>, %arg4: memref<1x128xf32, #tpu.memory_space<vmem>>, %arg5: memref<1x128xf32, #tpu.memory_space<vmem>>, %arg6: memref<128x128xbf16, #tpu.memory_space<vmem>>) attributes {dimension_semantics = [#tpu.dimension_semantics<parallel>], iteration_bounds = array<i64: 2>, scalar_prefetch = 0 : i64, scratch_operands = 0 : i64, tpu.core_type = #tpu.core_type<tc>, window_params = [{transform_indices = @transform_0, window_bounds = array<i64: 128, 192>}, {pipeline_mode = #tpu.pipeline_mode<synchronous>, transform_indices = @transform_1, window_bounds = array<i64: 192, 128>}, {pipeline_mode = #tpu.pipeline_mode<synchronous>, transform_indices = @transform_2, window_bounds = array<i64: 1, 128>}, {pipeline_mode = #tpu.pipeline_mode<synchronous>, transform_indices = @transform_3, window_bounds = array<i64: 1, 128>}, {pipeline_mode = #tpu.pipeline_mode<synchronous>, transform_indices = @transform_4, window_bounds = array<i64: 1, 128>}, {transform_indices = @transform_5, window_bounds = array<i64: 128, 128>}]} {
    %c0 = arith.constant 0 : index
    %c0_0 = arith.constant 0 : index
    %0 = vector.load %arg1[%c0, %c0_0] : memref<128x192xf32, #tpu.memory_space<vmem>>, vector<128x192xf32>
    %1 = arith.truncf %0 : vector<128x192xf32> to vector<128x192xbf16>
    %c0_1 = arith.constant 0 : index
    %c0_2 = arith.constant 0 : index
    %2 = vector.load %arg2[%c0_1, %c0_2] : memref<192x128xbf16, #tpu.memory_space<vmem>>, vector<192x128xbf16>
    %cst = arith.constant dense<0.000000e+00> : vector<128x128xf32>
    %3 = tpu.matmul %1, %2, %cst {dimension_numbers = #tpu.dot_dimension_numbers<[1], [0], [0], [1], [0, 0, 1, 1], [], []>} : vector<128x192xbf16>, vector<192x128xbf16>, vector<128x128xf32> -> vector<128x128xf32>
    %c0_3 = arith.constant 0 : index
    %c0_4 = arith.constant 0 : index
    %4 = vector.load %arg3[%c0_3, %c0_4] : memref<1x128xf32, #tpu.memory_space<vmem>>, vector<1x128xf32>
    %5 = vector.broadcast %4 : vector<1x128xf32> to vector<128x128xf32>
    %6 = arith.addf %3, %5 : vector<128x128xf32>
    %7 = tpu.iota {dimensions = array<i32: 1>} : vector<128x128xi32>
    %c64_i32 = arith.constant 64 : i32
    %8 = vector.broadcast %c64_i32 : i32 to vector<128x128xi32>
    %9 = arith.cmpi slt, %7, %8 : vector<128x128xi32>
    %cst_5 = arith.constant 0.000000e+00 : f32
    %10 = vector.broadcast %cst_5 : f32 to vector<128x128xf32>
    %11 = arith.select %9, %6, %10 : vector<128x128xi1>, vector<128x128xf32>
    %cst_6 = arith.constant dense<0.000000e+00> : vector<128xf32>
    %12 = vector.multi_reduction <add>, %11, %cst_6 [1] : vector<128x128xf32> to vector<128xf32>
    %13 = vector.shape_cast %12 : vector<128xf32> to vector<128x1xf32>
    %cst_7 = arith.constant 1.562500e-02 : f32
    %14 = vector.broadcast %cst_7 : f32 to vector<128x1xf32>
    %15 = arith.mulf %13, %14 : vector<128x1xf32>
    %16 = vector.broadcast %15 : vector<128x1xf32> to vector<128x128xf32>
    %17 = arith.subf %6, %16 : vector<128x128xf32>
    %18 = arith.mulf %17, %17 : vector<128x128xf32>
    %cst_8 = arith.constant 0.000000e+00 : f32
    %19 = vector.broadcast %cst_8 : f32 to vector<128x128xf32>
    %20 = arith.select %9, %18, %19 : vector<128x128xi1>, vector<128x128xf32>
    %cst_9 = arith.constant dense<0.000000e+00> : vector<128xf32>
    %21 = vector.multi_reduction <add>, %20, %cst_9 [1] : vector<128x128xf32> to vector<128xf32>
    %22 = vector.shape_cast %21 : vector<128xf32> to vector<128x1xf32>
    %cst_10 = arith.constant 1.562500e-02 : f32
    %23 = vector.broadcast %cst_10 : f32 to vector<128x1xf32>
    %24 = arith.mulf %22, %23 : vector<128x1xf32>
    %cst_11 = arith.constant 9.99999974E-6 : f32
    %25 = vector.broadcast %cst_11 : f32 to vector<128x1xf32>
    %26 = arith.addf %24, %25 : vector<128x1xf32>
    %27 = math.rsqrt %26 : vector<128x1xf32>
    %28 = vector.broadcast %27 : vector<128x1xf32> to vector<128x128xf32>
    %29 = arith.mulf %17, %28 : vector<128x128xf32>
    %c0_12 = arith.constant 0 : index
    %c0_13 = arith.constant 0 : index
    %30 = vector.load %arg4[%c0_12, %c0_13] : memref<1x128xf32, #tpu.memory_space<vmem>>, vector<1x128xf32>
    %31 = vector.broadcast %30 : vector<1x128xf32> to vector<128x128xf32>
    %32 = arith.mulf %29, %31 : vector<128x128xf32>
    %c0_14 = arith.constant 0 : index
    %c0_15 = arith.constant 0 : index
    %33 = vector.load %arg5[%c0_14, %c0_15] : memref<1x128xf32, #tpu.memory_space<vmem>>, vector<1x128xf32>
    %34 = vector.broadcast %33 : vector<1x128xf32> to vector<128x128xf32>
    %35 = arith.addf %32, %34 : vector<128x128xf32>
    %cst_16 = arith.constant -1.000000e+30 : f32
    %36 = vector.broadcast %cst_16 : f32 to vector<128x128xf32>
    %37 = arith.select %9, %35, %36 : vector<128x128xi1>, vector<128x128xf32>
    %cst_17 = arith.constant dense<0xFF800000> : vector<128xf32>
    %38 = vector.multi_reduction <maximumf>, %37, %cst_17 [1] : vector<128x128xf32> to vector<128xf32>
    %39 = vector.shape_cast %38 : vector<128xf32> to vector<128x1xf32>
    %40 = vector.broadcast %39 : vector<128x1xf32> to vector<128x128xf32>
    %41 = arith.subf %37, %40 : vector<128x128xf32>
    %42 = math.exp %41 : vector<128x128xf32>
    %cst_18 = arith.constant dense<0.000000e+00> : vector<128xf32>
    %43 = vector.multi_reduction <add>, %42, %cst_18 [1] : vector<128x128xf32> to vector<128xf32>
    %44 = vector.shape_cast %43 : vector<128xf32> to vector<128x1xf32>
    %45 = tpu.reciprocal %44 {approx = true} : vector<128x1xf32> -> vector<128x1xf32>
    %46 = vector.broadcast %45 : vector<128x1xf32> to vector<128x128xf32>
    %47 = arith.mulf %42, %46 : vector<128x128xf32>
    %48 = arith.truncf %47 : vector<128x128xf32> to vector<128x128xbf16>
    %c0_19 = arith.constant 0 : index
    %c0_20 = arith.constant 0 : index
    %49 = vector.load %arg6[%c0_19, %c0_20] : memref<128x128xbf16, #tpu.memory_space<vmem>>, vector<128x128xbf16>
    tpu.vector_store %arg6[%c0_19, %c0_20], %48 {strides = array<i32>} : memref<128x128xbf16, #tpu.memory_space<vmem>>, vector<128x128xbf16>,
    return
  }
  func.func @transform_0(%arg0: i32) -> (i32, i32) {
    %c0_i32 = arith.constant 0 : i32
    %c0_i32_0 = arith.constant 0 : i32
    return %arg0, %c0_i32 : i32, i32
  }
  func.func @transform_1(%arg0: i32) -> (i32, i32) {
    %c0_i32 = arith.constant 0 : i32
    %c0_i32_0 = arith.constant 0 : i32
    %c0_i32_1 = arith.constant 0 : i32
    return %c0_i32, %c0_i32_0 : i32, i32
  }
  func.func @transform_2(%arg0: i32) -> (i32, i32) {
    %c0_i32 = arith.constant 0 : i32
    %c0_i32_0 = arith.constant 0 : i32
    %c0_i32_1 = arith.constant 0 : i32
    return %c0_i32, %c0_i32_0 : i32, i32
  }
  func.func @transform_3(%arg0: i32) -> (i32, i32) {
    %c0_i32 = arith.constant 0 : i32
    %c0_i32_0 = arith.constant 0 : i32
    %c0_i32_1 = arith.constant 0 : i32
    return %c0_i32, %c0_i32_0 : i32, i32
  }
  func.func @transform_4(%arg0: i32) -> (i32, i32) {
    %c0_i32 = arith.constant 0 : i32
    %c0_i32_0 = arith.constant 0 : i32
    %c0_i32_1 = arith.constant 0 : i32
    return %c0_i32, %c0_i32_0 : i32, i32
  }
  func.func @transform_5(%arg0: i32) -> (i32, i32) {
    %c0_i32 = arith.constant 0 : i32
    %c0_i32_0 = arith.constant 0 : i32
    return %arg0, %c0_i32 : i32, i32
  }
}

</mosaic_0001>

<llo_original>
// kernel: visual_tokenizer_forward.1
$region0: #{visual_tokenizer_forward.1}
  #allocation0 [shape = 'u32[]', space=smem, size = 0x4, offset = 0x4, fixed_abs, tag = 'smem constant byte address 0x4 - core index']
  #allocation1 [shape = 'u32[144,128]{1,0:T(1,128)}', space=vmem, size = 0x12000, scoped, tag = 'internal scratch']
  %s0 = inlined_call_operand.vmem [shape: f32[256,192], index: 0, kind: input, shape index: {}]
  %s1 = inlined_call_operand.vmem [shape: bf16[192,128], index: 1, kind: input, shape index: {}]
  %s2 = inlined_call_operand.vmem [shape: f32[1,128], index: 2, kind: input, shape index: {}]
  %s3 = inlined_call_operand.vmem [shape: f32[1,128], index: 3, kind: input, shape index: {}]
  %s4 = inlined_call_operand.vmem [shape: f32[1,128], index: 4, kind: input, shape index: {}]
  %s5 = inlined_call_operand.hbm [shape: bf16[256,128], index: 5, kind: output, shape index: {}]
  %s6 = sld [smem:[#allocation0]]
  $region53: #{visual_tokenizer_forward.1} parent=0
    _
  %s8 = ssub.s32 1, %s6
  %s9 = scalar_select 0, %s8, %s6
  $region1: #{visual_tokenizer_forward.1} parent=0
    #allocation2 [shape = 'u8[65536]{0}', space=vmem, size = 0x10000, scoped, tag = 'output window, operand 0']
    #allocation3 [shape = 's32[2]{0}', space=sflag, size = 0x8, scoped, tag = 'scoped memory for visual_tokenizer_forward.1']
    %10 = vsyncpa [#allocation3], 0
    %s11 = scalar_lea.sflag [#allocation3], 1
    %12 = vsyncpa %s11, 0
    loop: start=0, step=1, limit=4
    $region2: #{visual_tokenizer_forward.1} parent=1 // loop_pre_header
      _
    $region3: #{visual_tokenizer_forward.1} parent=1 // loop_header
      %s14 = sphi 0, %s18
      %p15 = scmp.ge.s32.totalorder %s14, 4
      %s24 = sphi 0, %s26
      %s27 = sphi 0, %s24
      %s28 = sphi 0, %s27
      %s44 = sphi 0, %s28
      %s48 = sphi 0, %s48
      %s50 = sphi 0, %s48
      %s51 = sphi 0, %s50
      %s65 = sphi 0, %s51
      %s69 = sphi 0, %s69
      %s71 = sphi 0, %s69
      %s72 = sphi 0, %s71
      %s86 = sphi 0, %s72
      %s90 = sphi 0, %s90
      %s92 = sphi 0, %s90
      %s93 = sphi 0, %s92
      %s107 = sphi 0, %s93
      %s111 = sphi 0, %s111
      %s113 = sphi 0, %s111
      %s114 = sphi 0, %s113
      %s128 = sphi 0, %s114
      %s134 = sphi 0, %s136
      %s137 = sphi 0, %s134
      %s138 = sphi 0, %s137
      %s154 = sphi 0, %s138
    $region4: #{visual_tokenizer_forward.1} parent=1 // loop_header_branch
      %17 = sbr.rel (%p15) target = $region8
    $region5: #{visual_tokenizer_forward.1} parent=1 // loop_body
      %s19 = ssub.s32 %s14, 1
      %s20 = ssub.s32 %s14, 2
      %s21 = sadd.s32 %s14, 1
      %s22 = ssub.s32 %s14, %s21
      %p23 = scmp.eq.s32.totalorder %s22, 0
      %s25 = sadd.s32 %s24, 1
      %s26 = scalar_select %p23, %s24, %s25
      %p29 = pneg %p23
      %p30 = scmp.eq.s32.totalorder %s14, 1
      %p31 = por %p29, %p30
      %p32 = scmp.ne.s32.totalorder %s24, %s27
      %p33 = scmp.eq.s32.totalorder %s14, 0
      %p34 = por %p32, %p33
      %p35 = scmp.ne.s32.totalorder %s24, %s27
      %p36 = scmp.eq.s32.totalorder %s19, 1
      %p37 = por %p35, %p36
      %p38 = scmp.ne.s32.totalorder %s27, %s28
      %p39 = scmp.eq.s32.totalorder %s19, 0
      %p40 = por %p38, %p39
      %p41 = scmp.ne.s32.totalorder %s27, %s28
      %p42 = scmp.eq.s32.totalorder %s20, 1
      %p43 = por %p41, %p42
      %p45 = scmp.ne.s32.totalorder %s28, %s44
      %p46 = scmp.eq.s32.totalorder %s20, 0
      %p47 = por %p45, %p46
      %s49 = sadd.s32 %s48, 1
      %p52 = scmp.eq.s32.totalorder %s14, 1
      %p53 = scmp.ne.s32.totalorder %s48, %s50
      %p54 = scmp.eq.s32.totalorder %s14, 0
      %p55 = por %p53, %p54
      %p56 = scmp.ne.s32.totalorder %s48, %s50
      %p57 = scmp.eq.s32.totalorder %s19, 1
      %p58 = por %p56, %p57
      %p59 = scmp.ne.s32.totalorder %s50, %s51
      %p60 = scmp.eq.s32.totalorder %s19, 0
      %p61 = por %p59, %p60
      %p62 = scmp.ne.s32.totalorder %s50, %s51
      %p63 = scmp.eq.s32.totalorder %s20, 1
      %p64 = por %p62, %p63
      %p66 = scmp.ne.s32.totalorder %s51, %s65
      %p67 = scmp.eq.s32.totalorder %s20, 0
      %p68 = por %p66, %p67
      %s70 = sadd.s32 %s69, 1
      %p73 = scmp.eq.s32.totalorder %s14, 1
      %p74 = scmp.ne.s32.totalorder %s69, %s71
      %p75 = scmp.eq.s32.totalorder %s14, 0
      %p76 = por %p74, %p75
      %p77 = scmp.ne.s32.totalorder %s69, %s71
      %p78 = scmp.eq.s32.totalorder %s19, 1
      %p79 = por %p77, %p78
      %p80 = scmp.ne.s32.totalorder %s71, %s72
      %p81 = scmp.eq.s32.totalorder %s19, 0
      %p82 = por %p80, %p81
      %p83 = scmp.ne.s32.totalorder %s71, %s72
      %p84 = scmp.eq.s32.totalorder %s20, 1
      %p85 = por %p83, %p84
      %p87 = scmp.ne.s32.totalorder %s72, %s86
      %p88 = scmp.eq.s32.totalorder %s20, 0
      %p89 = por %p87, %p88
      %s91 = sadd.s32 %s90, 1
      %p94 = scmp.eq.s32.totalorder %s14, 1
      %p95 = scmp.ne.s32.totalorder %s90, %s92
      %p96 = scmp.eq.s32.totalorder %s14, 0
      %p97 = por %p95, %p96
      %p98 = scmp.ne.s32.totalorder %s90, %s92
      %p99 = scmp.eq.s32.totalorder %s19, 1
      %p100 = por %p98, %p99
      %p101 = scmp.ne.s32.totalorder %s92, %s93
      %p102 = scmp.eq.s32.totalorder %s19, 0
      %p103 = por %p101, %p102
      %p104 = scmp.ne.s32.totalorder %s92, %s93
      %p105 = scmp.eq.s32.totalorder %s20, 1
      %p106 = por %p104, %p105
      %p108 = scmp.ne.s32.totalorder %s93, %s107
      %p109 = scmp.eq.s32.totalorder %s20, 0
      %p110 = por %p108, %p109
      %s112 = sadd.s32 %s111, 1
      %p115 = scmp.eq.s32.totalorder %s14, 1
      %p116 = scmp.ne.s32.totalorder %s111, %s113
      %p117 = scmp.eq.s32.totalorder %s14, 0
      %p118 = por %p116, %p117
      %p119 = scmp.ne.s32.totalorder %s111, %s113
      %p120 = scmp.eq.s32.totalorder %s19, 1
      %p121 = por %p119, %p120
      %p122 = scmp.ne.s32.totalorder %s113, %s114
      %p123 = scmp.eq.s32.totalorder %s19, 0
      %p124 = por %p122, %p123
      %p125 = scmp.ne.s32.totalorder %s113, %s114
      %p126 = scmp.eq.s32.totalorder %s20, 1
      %p127 = por %p125, %p126
      %p129 = scmp.ne.s32.totalorder %s114, %s128
      %p130 = scmp.eq.s32.totalorder %s20, 0
      %p131 = por %p129, %p130
      %s132 = ssub.s32 %s14, %s21
      %p133 = scmp.eq.s32.totalorder %s132, 0
      %s135 = sadd.s32 %s134, 1
      %s136 = scalar_select %p133, %s134, %s135
      %p139 = pneg %p133
      %p140 = scmp.eq.s32.totalorder %s14, 1
      %p141 = por %p139, %p140
      %p142 = scmp.ne.s32.totalorder %s134, %s137
      %p143 = scmp.eq.s32.totalorder %s14, 0
      %p144 = por %p142, %p143
      %p145 = scmp.ne.s32.totalorder %s134, %s137
      %p146 = scmp.eq.s32.totalorder %s19, 1
      %p147 = por %p145, %p146
      %p148 = scmp.ne.s32.totalorder %s137, %s138
      %p149 = scmp.eq.s32.totalorder %s19, 0
      %p150 = por %p148, %p149
      %p151 = scmp.ne.s32.totalorder %s137, %s138
      %p152 = scmp.eq.s32.totalorder %s20, 1
      %p153 = por %p151, %p152
      %p155 = scmp.ne.s32.totalorder %s138, %s154
      %p156 = scmp.eq.s32.totalorder %s20, 0
      %p157 = por %p155, %p156
      %p158 = scmp.le.s32.totalorder 1, %s14
      %p159 = scmp.lt.s32.totalorder %s14, 3
      %p160 = pnand %p158, %p159
      %p161 = pneg %p160
      // Predicated region
      $region9: #{visual_tokenizer_forward.1} parent=5 // pred_check
        _
      $region10: #{visual_tokenizer_forward.1} parent=5 // pred_check_branch
        %163 = sbr.rel (%p160) target = $region12
      $region11: #{visual_tokenizer_forward.1} parent=5 // pred_region
        %s164 = ssub.s32 %s14, 1
        // Predicated region
        $region13: #{visual_tokenizer_forward.1} parent=11 // pred_check
          %p165 = pneg %p61
        $region14: #{visual_tokenizer_forward.1} parent=11 // pred_check_branch
          %167 = sbr.rel (%p165) target = $region16
        $region15: #{visual_tokenizer_forward.1} parent=11 // pred_region
          _
        $region16: #{visual_tokenizer_forward.1} parent=11 // pred_fallthru
          _
        // Predicated region
        $region17: #{visual_tokenizer_forward.1} parent=11 // pred_check
          %p168 = pneg %p82
        $region18: #{visual_tokenizer_forward.1} parent=11 // pred_check_branch
          %170 = sbr.rel (%p168) target = $region20
        $region19: #{visual_tokenizer_forward.1} parent=11 // pred_region
          _
        $region20: #{visual_tokenizer_forward.1} parent=11 // pred_fallthru
          _
        // Predicated region
        $region21: #{visual_tokenizer_forward.1} parent=11 // pred_check
          %p171 = pneg %p103
        $region22: #{visual_tokenizer_forward.1} parent=11 // pred_check_branch
          %173 = sbr.rel (%p171) target = $region24
        $region23: #{visual_tokenizer_forward.1} parent=11 // pred_region
          _
        $region24: #{visual_tokenizer_forward.1} parent=11 // pred_fallthru
          _
        // Predicated region
        $region25: #{visual_tokenizer_forward.1} parent=11 // pred_check
          %p174 = pneg %p124
        $region26: #{visual_tokenizer_forward.1} parent=11 // pred_check_branch
          %176 = sbr.rel (%p174) target = $region28
        $region27: #{visual_tokenizer_forward.1} parent=11 // pred_region
          _
        $region28: #{visual_tokenizer_forward.1} parent=11 // pred_fallthru
          _
      $region12: #{visual_tokenizer_forward.1} parent=5 // pred_fallthru
        _
      %p177 = scmp.lt.s32.totalorder %s14, 2
      // Predicated region
      $region29: #{visual_tokenizer_forward.1} parent=5 // pred_check
        %p178 = pneg %p177
      $region30: #{visual_tokenizer_forward.1} parent=5 // pred_check_branch
        %180 = sbr.rel (%p178) target = $region32
      $region31: #{visual_tokenizer_forward.1} parent=5 // pred_region
        // Predicated region
        $region33: #{visual_tokenizer_forward.1} parent=31 // pred_check
          %p181 = pneg %p34
        $region34: #{visual_tokenizer_forward.1} parent=31 // pred_check_branch
          %183 = sbr.rel (%p181) target = $region36
        $region35: #{visual_tokenizer_forward.1} parent=31 // pred_region
          %s184 = smul.u32 16, %s14
          %p185 = scmp.lt.s32.totalorder %s184, 31
          %s186 = scalar_select %p185, %s184, 31
          %s187 = smul.addr %s186, 2
          %s188 = smul.addr %s187, 8
          %s189 = scalar_lea.vmem %s0, %s188
          %s190 = smul.u32 16, %s14
        $region36: #{visual_tokenizer_forward.1} parent=31 // pred_fallthru
          _
      $region32: #{visual_tokenizer_forward.1} parent=5 // pred_fallthru
        _
      %p191 = scmp.le.s32.totalorder 1, %s14
      %p192 = scmp.lt.s32.totalorder %s14, 3
      %p193 = pnand %p191, %p192
      %p194 = pneg %p193
      // Predicated region
      $region37: #{visual_tokenizer_forward.1} parent=5 // pred_check
        _
      $region38: #{visual_tokenizer_forward.1} parent=5 // pred_check_branch
        %196 = sbr.rel (%p193) target = $region40
      $region39: #{visual_tokenizer_forward.1} parent=5 // pred_region
        %s197 = ssub.s32 %s14, 1
        %s198 = smul.u32 16, %s19
        %p199 = scmp.lt.s32.totalorder %s198, 31
        %s200 = scalar_select %p199, %s198, 31
        %s201 = smul.addr %s200, 2
        %s202 = smul.addr %s201, 8
        %s203 = scalar_lea.vmem %s0, %s202
        %p204 = pneg %p40
        %p205 = pneg %p37
        %p206 = pneg %p61
        %p207 = pneg %p58
        %p208 = pneg %p82
        %p209 = pneg %p79
        %p210 = pneg %p103
        %p211 = pneg %p100
        %p212 = pneg %p124
        %p213 = pneg %p121
        %p214 = pneg %p150
        %p215 = pneg %p147
        %s216 = sand.u32 %s137, 1
        %s217 = scalar_lea.sflag [#allocation3], %s216
        %s218 = sand.u32 %s137, 1
        %s219 = smul.addr %s218, 64
        %s220 = scalar_lea.vmem [#allocation2], %s219
        %s221 = smul.u32 16, %s19
        %p222 = scmp.lt.s32.totalorder %s221, 31
        %s223 = scalar_select %p222, %s221, 31
        %s224 = smul.addr %s223, 2
        %s225 = smul.addr %s224, 8
        %s226 = scalar_lea.vmem %s0, %s225
        %s227 = smul.u32 16, %s19
        %s228 = smul.u32 16, %s19
        %v230 = vld [vmem:[%s226] sm:$0xff]
        %v231 = vld [vmem:[%s226 + $0x8] sm:$0xff]
        %v232 = vld [vmem:[%s226 + $0x10] sm:$0xff]
        %v233 = vld [vmem:[%s226 + $0x18] sm:$0xff]
        %v234 = vld [vmem:[%s226 + $0x20] sm:$0xff]
        %v235 = vld [vmem:[%s226 + $0x28] sm:$0xff]
        %v236 = vld [vmem:[%s226 + $0x30] sm:$0xff]
        %v237 = vld [vmem:[%s226 + $0x38] sm:$0xff]
        %v238 = vld [vmem:[%s226 + $0x40] sm:$0xff]
        %v239 = vld [vmem:[%s226 + $0x48] sm:$0xff]
        %v240 = vld [vmem:[%s226 + $0x50] sm:$0xff]
        %v241 = vld [vmem:[%s226 + $0x58] sm:$0xff]
        %v242 = vld [vmem:[%s226 + $0x60] sm:$0xff]
        %v243 = vld [vmem:[%s226 + $0x68] sm:$0xff]
        %v244 = vld [vmem:[%s226 + $0x70] sm:$0xff]
        %v245 = vld [vmem:[%s226 + $0x78] sm:$0xff]
        %v246 = vld [vmem:[%s226 + $0x80] sm:$0xff]
        %v247 = vld [vmem:[%s226 + $0x88] sm:$0xff]
        %v248 = vld [vmem:[%s226 + $0x90] sm:$0xff]
        %v249 = vld [vmem:[%s226 + $0x98] sm:$0xff]
        %v250 = vld [vmem:[%s226 + $0xa0] sm:$0xff]
        %v251 = vld [vmem:[%s226 + $0xa8] sm:$0xff]
        %v252 = vld [vmem:[%s226 + $0xb0] sm:$0xff]
        %v253 = vld [vmem:[%s226 + $0xb8] sm:$0xff]
        %v254 = vld [vmem:[%s226 + $0xc0] sm:$0xff]
        %v255 = vld [vmem:[%s226 + $0xc8] sm:$0xff]
        %v256 = vld [vmem:[%s226 + $0xd0] sm:$0xff]
        %v257 = vld [vmem:[%s226 + $0xd8] sm:$0xff]
        %v258 = vld [vmem:[%s226 + $0xe0] sm:$0xff]
        %v259 = vld [vmem:[%s226 + $0xe8] sm:$0xff]
        %v260 = vld [vmem:[%s226 + $0xf0] sm:$0xff]
        %v261 = vld [vmem:[%s226 + $0xf8] sm:$0xff]
        %v262 = vpack.c.bf16 %v232, %v230
        %v263 = vpack.c.bf16 %v233, %v231
        %v264 = vpack.c.bf16 %v236, %v234
        %v265 = vpack.c.bf16 %v237, %v235
        %v266 = vpack.c.bf16 %v240, %v238
        %v267 = vpack.c.bf16 %v241, %v239
        %v268 = vpack.c.bf16 %v244, %v242
        %v269 = vpack.c.bf16 %v245, %v243
        %v270 = vpack.c.bf16 %v248, %v246
        %v271 = vpack.c.bf16 %v249, %v247
        %v272 = vpack.c.bf16 %v252, %v250
        %v273 = vpack.c.bf16 %v253, %v251
        %v274 = vpack.c.bf16 %v256, %v254
        %v275 = vpack.c.bf16 %v257, %v255
        %v276 = vpack.c.bf16 %v260, %v258
        %v277 = vpack.c.bf16 %v261, %v259
        %v278 = vld [vmem:[%s1] sm:$0xf]
        %v279 = vld [vmem:[%s1 + $0x4] sm:$0xf]
        %v280 = vld [vmem:[%s1 + $0x8] sm:$0xf]
        %v281 = vld [vmem:[%s1 + $0xc] sm:$0xf]
        %v282 = vld [vmem:[%s1 + $0x10] sm:$0xf]
        %v283 = vld [vmem:[%s1 + $0x14] sm:$0xf]
        %v284 = vld [vmem:[%s1 + $0x18] sm:$0xf]
        %v285 = vld [vmem:[%s1 + $0x1c] sm:$0xf]
        %v286 = vld [vmem:[%s1 + $0x20] sm:$0xf]
        %v287 = vld [vmem:[%s1 + $0x24] sm:$0xf]
        %v288 = vld [vmem:[%s1 + $0x28] sm:$0xf]
        %v289 = vld [vmem:[%s1 + $0x2c] sm:$0xf]
        %v290 = vld [vmem:[%s1 + $0x30] sm:$0xf]
        %v291 = vld [vmem:[%s1 + $0x34] sm:$0xf]
        %v292 = vld [vmem:[%s1 + $0x38] sm:$0xf]
        %v293 = vld [vmem:[%s1 + $0x3c] sm:$0xf]
        %v294 = vld [vmem:[%s1 + $0x40] sm:$0xf]
        %v295 = vld [vmem:[%s1 + $0x44] sm:$0xf]
        %v296 = vld [vmem:[%s1 + $0x48] sm:$0xf]
        %v297 = vld [vmem:[%s1 + $0x4c] sm:$0xf]
        %v298 = vld [vmem:[%s1 + $0x50] sm:$0xf]
        %v299 = vld [vmem:[%s1 + $0x54] sm:$0xf]
        %v300 = vld [vmem:[%s1 + $0x58] sm:$0xf]
        %v301 = vld [vmem:[%s1 + $0x5c] sm:$0xf]
        %v302 = vld [vmem:[%s2] sm:$0x1]
        %v304 = vlaneseq
        %v305 = vshrl.u32 %v304, 7
        %v306 = vsub.s32 0, %v305
        %v307 = vrot.slane %v302, %v306
        %v333 = vunpack.c.l.b16 %v278
        %v334 = vunpack.c.l.b16 %v279
        %v335 = vunpack.c.l.b16 %v280
        %v336 = vunpack.c.l.b16 %v281
        %v337 = vunpack.c.l.b16 %v282
        %v338 = vunpack.c.l.b16 %v283
        %v339 = vunpack.c.l.b16 %v284
        %v340 = vunpack.c.l.b16 %v285
        %v341 = vunpack.c.l.b16 %v286
        %v342 = vunpack.c.l.b16 %v287
        %v343 = vunpack.c.l.b16 %v288
        %v344 = vunpack.c.l.b16 %v289
        %v345 = vunpack.c.l.b16 %v290
        %v346 = vunpack.c.l.b16 %v291
        %v347 = vunpack.c.l.b16 %v292
        %v348 = vunpack.c.l.b16 %v293
        %v349 = vunpack.c.l.b16 %v294
        %v350 = vunpack.c.l.b16 %v295
        %v351 = vunpack.c.l.b16 %v296
        %v352 = vunpack.c.l.b16 %v297
        %v353 = vunpack.c.l.b16 %v298
        %v354 = vunpack.c.l.b16 %v299
        %v355 = vunpack.c.l.b16 %v300
        %v356 = vunpack.c.l.b16 %v301
        %v357 = vpack.c.b16 %v334, %v333
        %v358 = vpack.c.b16 %v336, %v335
        %v359 = vpack.c.b16 %v338, %v337
        %v360 = vpack.c.b16 %v340, %v339
        %v361 = vpack.c.b16 %v342, %v341
        %v362 = vpack.c.b16 %v344, %v343
        %v363 = vpack.c.b16 %v346, %v345
        %v364 = vpack.c.b16 %v348, %v347
        %v365 = vpack.c.b16 %v350, %v349
        %v366 = vpack.c.b16 %v352, %v351
        %v367 = vpack.c.b16 %v354, %v353
        %v368 = vpack.c.b16 %v356, %v355
        %vm381 = vcmask 523264
        %v383 = vsel %vm381, %v263, 0
        %v386 = vsel %vm381, %v265, 0
        %v389 = vsel %vm381, %v267, 0
        %v392 = vsel %vm381, %v269, 0
        %v395 = vsel %vm381, %v271, 0
        %v398 = vsel %vm381, %v273, 0
        %v401 = vsel %vm381, %v275, 0
        %v404 = vsel %vm381, %v277, 0
        %406 = vmatprep.subr.bf16.mxu0 0
        %407 = vmatpush1.bf16.msra.mxu0 %v364
        %408 = vmatprep.subr.bf16.mxu0 0
        %409 = vmatpush1.bf16.msra.mxu0 %v363
        %410 = vmatprep.subr.bf16.mxu0 0
        %411 = vmatpush1.bf16.msra.mxu0 %v362
        %412 = vmatprep.subr.bf16.mxu0 0
        %413 = vmatpush1.bf16.msra.mxu0 %v361
        %414 = vmatprep.subr.bf16.mxu0 0
        %415 = vmatpush1.bf16.msra.mxu0 %v360
        %416 = vmatprep.subr.bf16.mxu0 0
        %417 = vmatpush1.bf16.msra.mxu0 %v359
        %418 = vmatprep.subr.bf16.mxu0 0
        %419 = vmatpush1.bf16.msra.mxu0 %v358
        %420 = vmatprep.subr.bf16.mxu0 0
        %421 = vmatpush1.bf16.msra.mxu0 %v357
        %422 = vmatprep.subr.bf16.mxu0 0
        %423 = vmatpush2.bf16.msra.mxu0 0
        %424 = vmatprep.subr.bf16.mxu0 0
        %425 = vmatpush2.bf16.msra.mxu0 0
        %426 = vmatprep.subr.bf16.mxu0 0
        %427 = vmatpush2.bf16.msra.mxu0 0
        %428 = vmatprep.subr.bf16.mxu0 0
        %429 = vmatpush2.bf16.msra.mxu0 0
        %430 = vmatprep.subr.bf16.mxu0 0
        %431 = vmatpush2.bf16.msra.mxu0 %v368
        %432 = vmatprep.subr.bf16.mxu0 0
        %433 = vmatpush2.bf16.msra.mxu0 %v367
        %434 = vmatprep.subr.bf16.mxu0 0
        %435 = vmatpush2.bf16.msra.mxu0 %v366
        %436 = vmatprep.subr.bf16.mxu0 0
        %437 = vmatpush2.bf16.msra.mxu0 %v365
        %438 = vmatprep.mubr.bf16.mxu0 %v383
        %439 = vmatmul.mubr.bf16.gmra.mxu0 %v262
        %v440 = vpop.f32.mrf.mxu0
        %v441 = vadd.f32 %v307, %v440
        %v442 = vpop.f32.mrf.mxu0
        %v443 = vpop.f32.mrf.mxu0
        %v444 = vadd.f32 %v307, %v443
        %v445 = vpop.f32.mrf.mxu0
        %446 = vmatprep.mubr.bf16.mxu0 %v386
        %447 = vmatmul.mubr.bf16.gmra.mxu0 %v264
        %v448 = vpop.f32.mrf.mxu0
        %v449 = vadd.f32 %v307, %v448
        %v450 = vpop.f32.mrf.mxu0
        %v451 = vpop.f32.mrf.mxu0
        %v452 = vadd.f32 %v307, %v451
        %v453 = vpop.f32.mrf.mxu0
        %454 = vmatprep.mubr.bf16.mxu0 %v389
        %455 = vmatmul.mubr.bf16.gmra.mxu0 %v266
        %v456 = vpop.f32.mrf.mxu0
        %v457 = vadd.f32 %v307, %v456
        %v458 = vpop.f32.mrf.mxu0
        %v459 = vpop.f32.mrf.mxu0
        %v460 = vadd.f32 %v307, %v459
        %v461 = vpop.f32.mrf.mxu0
        %462 = vmatprep.mubr.bf16.mxu0 %v392
        %463 = vmatmul.mubr.bf16.gmra.mxu0 %v268
        %v464 = vpop.f32.mrf.mxu0
        %v465 = vadd.f32 %v307, %v464
        %v466 = vpop.f32.mrf.mxu0
        %v467 = vpop.f32.mrf.mxu0
        %v468 = vadd.f32 %v307, %v467
        %v469 = vpop.f32.mrf.mxu0
        %470 = vmatprep.mubr.bf16.mxu0 %v395
        %471 = vmatmul.mubr.bf16.gmra.mxu0 %v270
        %v472 = vpop.f32.mrf.mxu0
        %v473 = vadd.f32 %v307, %v472
        %v474 = vpop.f32.mrf.mxu0
        %v475 = vpop.f32.mrf.mxu0
        %v476 = vadd.f32 %v307, %v475
        %v477 = vpop.f32.mrf.mxu0
        %478 = vmatprep.mubr.bf16.mxu0 %v398
        %479 = vmatmul.mubr.bf16.gmra.mxu0 %v272
        %v480 = vpop.f32.mrf.mxu0
        %v481 = vadd.f32 %v307, %v480
        %v482 = vpop.f32.mrf.mxu0
        %v483 = vpop.f32.mrf.mxu0
        %v484 = vadd.f32 %v307, %v483
        %v485 = vpop.f32.mrf.mxu0
        %486 = vmatprep.mubr.bf16.mxu0 %v401
        %487 = vmatmul.mubr.bf16.gmra.mxu0 %v274
        %v488 = vpop.f32.mrf.mxu0
        %v489 = vadd.f32 %v307, %v488
        %v490 = vpop.f32.mrf.mxu0
        %v491 = vpop.f32.mrf.mxu0
        %v492 = vadd.f32 %v307, %v491
        %v493 = vpop.f32.mrf.mxu0
        %494 = vmatprep.mubr.bf16.mxu0 %v404
        %495 = vmatmul.mubr.bf16.gmra.mxu0 %v276
        %v496 = vpop.f32.mrf.mxu0
        %v497 = vadd.f32 %v307, %v496
        %v498 = vpop.f32.mrf.mxu0
        %v499 = vpop.f32.mrf.mxu0
        %v500 = vadd.f32 %v307, %v499
        %v501 = vpop.f32.mrf.mxu0
        %502 = vdwg.mxu0
        %v503 = vlaneseq
        %v504 = vand.u32 %v503, 127
        %vm505 = vcmp.lt.s32.totalorder %v504, 64
        %v506 = vsel %vm505, %v441, 0.0
        %v507 = vsel %vm505, %v444, 0.0
        %v508 = vsel %vm505, %v449, 0.0
        %v509 = vsel %vm505, %v452, 0.0
        %v510 = vsel %vm505, %v457, 0.0
        %v511 = vsel %vm505, %v460, 0.0
        %v512 = vsel %vm505, %v465, 0.0
        %v513 = vsel %vm505, %v468, 0.0
        %v514 = vsel %vm505, %v473, 0.0
        %v515 = vsel %vm505, %v476, 0.0
        %v516 = vsel %vm505, %v481, 0.0
        %v517 = vsel %vm505, %v484, 0.0
        %v518 = vsel %vm505, %v489, 0.0
        %v519 = vsel %vm505, %v492, 0.0
        %v520 = vsel %vm505, %v497, 0.0
        %v521 = vsel %vm505, %v500, 0.0
        %522 = vadd.xlane.f32.xlu0 %v506
        %v523 = vpop.xlane.xlu0 %522
        %524 = vadd.xlane.f32.xlu0 %v507
        %v525 = vpop.xlane.xlu0 %524
        %526 = vadd.xlane.f32.xlu0 %v508
        %v527 = vpop.xlane.xlu0 %526
        %528 = vadd.xlane.f32.xlu0 %v509
        %v529 = vpop.xlane.xlu0 %528
        %530 = vadd.xlane.f32.xlu0 %v510
        %v531 = vpop.xlane.xlu0 %530
        %532 = vadd.xlane.f32.xlu0 %v511
        %v533 = vpop.xlane.xlu0 %532
        %534 = vadd.xlane.f32.xlu0 %v512
        %v535 = vpop.xlane.xlu0 %534
        %536 = vadd.xlane.f32.xlu0 %v513
        %v537 = vpop.xlane.xlu0 %536
        %538 = vadd.xlane.f32.xlu0 %v514
        %v539 = vpop.xlane.xlu0 %538
        %540 = vadd.xlane.f32.xlu0 %v515
        %v541 = vpop.xlane.xlu0 %540
        %542 = vadd.xlane.f32.xlu0 %v516
        %v543 = vpop.xlane.xlu0 %542
        %544 = vadd.xlane.f32.xlu0 %v517
        %v545 = vpop.xlane.xlu0 %544
        %546 = vadd.xlane.f32.xlu0 %v518
        %v547 = vpop.xlane.xlu0 %546
        %548 = vadd.xlane.f32.xlu0 %v519
        %v549 = vpop.xlane.xlu0 %548
        %550 = vadd.xlane.f32.xlu0 %v520
        %v551 = vpop.xlane.xlu0 %550
        %552 = vadd.xlane.f32.xlu0 %v521
        %v553 = vpop.xlane.xlu0 %552
        %v554 = vmul.f32 %v523, 0.015625
        %v555 = vmul.f32 %v525, 0.015625
        %v556 = vmul.f32 %v527, 0.015625
        %v557 = vmul.f32 %v529, 0.015625
        %v558 = vmul.f32 %v531, 0.015625
        %v559 = vmul.f32 %v533, 0.015625
        %v560 = vmul.f32 %v535, 0.015625
        %v561 = vmul.f32 %v537, 0.015625
        %v562 = vmul.f32 %v539, 0.015625
        %v563 = vmul.f32 %v541, 0.015625
        %v564 = vmul.f32 %v543, 0.015625
        %v565 = vmul.f32 %v545, 0.015625
        %v566 = vmul.f32 %v547, 0.015625
        %v567 = vmul.f32 %v549, 0.015625
        %v568 = vmul.f32 %v551, 0.015625
        %v569 = vmul.f32 %v553, 0.015625
        %v570 = vsub.f32 %v441, %v554
        %v571 = vsub.f32 %v444, %v555
        %v572 = vsub.f32 %v449, %v556
        %v573 = vsub.f32 %v452, %v557
        %v574 = vsub.f32 %v457, %v558
        %v575 = vsub.f32 %v460, %v559
        %v576 = vsub.f32 %v465, %v560
        %v577 = vsub.f32 %v468, %v561
        %v578 = vsub.f32 %v473, %v562
        %v579 = vsub.f32 %v476, %v563
        %v580 = vsub.f32 %v481, %v564
        %v581 = vsub.f32 %v484, %v565
        %v582 = vsub.f32 %v489, %v566
        %v583 = vsub.f32 %v492, %v567
        %v584 = vsub.f32 %v497, %v568
        %v585 = vsub.f32 %v500, %v569
        %v586 = vmul.f32 %v570, %v570
        %v587 = vmul.f32 %v571, %v571
        %v588 = vmul.f32 %v572, %v572
        %v589 = vmul.f32 %v573, %v573
        %v590 = vmul.f32 %v574, %v574
        %v591 = vmul.f32 %v575, %v575
        %v592 = vmul.f32 %v576, %v576
        %v593 = vmul.f32 %v577, %v577
        %v594 = vmul.f32 %v578, %v578
        %v595 = vmul.f32 %v579, %v579
        %v596 = vmul.f32 %v580, %v580
        %v597 = vmul.f32 %v581, %v581
        %v598 = vmul.f32 %v582, %v582
        %v599 = vmul.f32 %v583, %v583
        %v600 = vmul.f32 %v584, %v584
        %v601 = vmul.f32 %v585, %v585
        %v602 = vsel %vm505, %v586, 0.0
        %v603 = vsel %vm505, %v587, 0.0
        %v604 = vsel %vm505, %v588, 0.0
        %v605 = vsel %vm505, %v589, 0.0
        %v606 = vsel %vm505, %v590, 0.0
        %v607 = vsel %vm505, %v591, 0.0
        %v608 = vsel %vm505, %v592, 0.0
        %v609 = vsel %vm505, %v593, 0.0
        %v610 = vsel %vm505, %v594, 0.0
        %v611 = vsel %vm505, %v595, 0.0
        %v612 = vsel %vm505, %v596, 0.0
        %v613 = vsel %vm505, %v597, 0.0
        %v614 = vsel %vm505, %v598, 0.0
        %v615 = vsel %vm505, %v599, 0.0
        %v616 = vsel %vm505, %v600, 0.0
        %v617 = vsel %vm505, %v601, 0.0
        %618 = vadd.xlane.f32.xlu0 %v602
        %v619 = vpop.xlane.xlu0 %618
        %620 = vadd.xlane.f32.xlu0 %v603
        %v621 = vpop.xlane.xlu0 %620
        %622 = vadd.xlane.f32.xlu0 %v604
        %v623 = vpop.xlane.xlu0 %622
        %624 = vadd.xlane.f32.xlu0 %v605
        %v625 = vpop.xlane.xlu0 %624
        %626 = vadd.xlane.f32.xlu0 %v606
        %v627 = vpop.xlane.xlu0 %626
        %628 = vadd.xlane.f32.xlu0 %v607
        %v629 = vpop.xlane.xlu0 %628
        %630 = vadd.xlane.f32.xlu0 %v608
        %v631 = vpop.xlane.xlu0 %630
        %632 = vadd.xlane.f32.xlu0 %v609
        %v633 = vpop.xlane.xlu0 %632
        %634 = vadd.xlane.f32.xlu0 %v610
        %v635 = vpop.xlane.xlu0 %634
        %636 = vadd.xlane.f32.xlu0 %v611
        %v637 = vpop.xlane.xlu0 %636
        %638 = vadd.xlane.f32.xlu0 %v612
        %v639 = vpop.xlane.xlu0 %638
        %640 = vadd.xlane.f32.xlu0 %v613
        %v641 = vpop.xlane.xlu0 %640
        %642 = vadd.xlane.f32.xlu0 %v614
        %v643 = vpop.xlane.xlu0 %642
        %644 = vadd.xlane.f32.xlu0 %v615
        %v645 = vpop.xlane.xlu0 %644
        %646 = vadd.xlane.f32.xlu0 %v616
        %v647 = vpop.xlane.xlu0 %646
        %648 = vadd.xlane.f32.xlu0 %v617
        %v649 = vpop.xlane.xlu0 %648
        %v650 = vmul.f32 %v619, 0.015625
        %v651 = vmul.f32 %v621, 0.015625
        %v652 = vmul.f32 %v623, 0.015625
        %v653 = vmul.f32 %v625, 0.015625
        %v654 = vmul.f32 %v627, 0.015625
        %v655 = vmul.f32 %v629, 0.015625
        %v656 = vmul.f32 %v631, 0.015625
        %v657 = vmul.f32 %v633, 0.015625
        %v658 = vmul.f32 %v635, 0.015625
        %v659 = vmul.f32 %v637, 0.015625
        %v660 = vmul.f32 %v639, 0.015625
        %v661 = vmul.f32 %v641, 0.015625
        %v662 = vmul.f32 %v643, 0.015625
        %v663 = vmul.f32 %v645, 0.015625
        %v664 = vmul.f32 %v647, 0.015625
        %v665 = vmul.f32 %v649, 0.015625
        %v666 = vadd.f32 %v650, 1e-05
        %v667 = vadd.f32 %v651, 1e-05
        %v668 = vadd.f32 %v652, 1e-05
        %v669 = vadd.f32 %v653, 1e-05
        %v670 = vadd.f32 %v654, 1e-05
        %v671 = vadd.f32 %v655, 1e-05
        %v672 = vadd.f32 %v656, 1e-05
        %v673 = vadd.f32 %v657, 1e-05
        %v674 = vadd.f32 %v658, 1e-05
        %v675 = vadd.f32 %v659, 1e-05
        %v676 = vadd.f32 %v660, 1e-05
        %v677 = vadd.f32 %v661, 1e-05
        %v678 = vadd.f32 %v662, 1e-05
        %v679 = vadd.f32 %v663, 1e-05
        %v680 = vadd.f32 %v664, 1e-05
        %v681 = vadd.f32 %v665, 1e-05
        %v682 = vrsqrt.pop %v666
        %v683 = vrsqrt.pop %v667
        %v684 = vrsqrt.pop %v668
        %v685 = vrsqrt.pop %v669
        %v686 = vrsqrt.pop %v670
        %v687 = vrsqrt.pop %v671
        %v688 = vrsqrt.pop %v672
        %v689 = vrsqrt.pop %v673
        %v690 = vrsqrt.pop %v674
        %v691 = vrsqrt.pop %v675
        %v692 = vrsqrt.pop %v676
        %v693 = vrsqrt.pop %v677
        %v694 = vrsqrt.pop %v678
        %v695 = vrsqrt.pop %v679
        %v696 = vrsqrt.pop %v680
        %v697 = vrsqrt.pop %v681
        %v698 = vmul.f32 %v570, %v682
        %v699 = vmul.f32 %v571, %v683
        %v700 = vmul.f32 %v572, %v684
        %v701 = vmul.f32 %v573, %v685
        %v702 = vmul.f32 %v574, %v686
        %v703 = vmul.f32 %v575, %v687
        %v704 = vmul.f32 %v576, %v688
        %v705 = vmul.f32 %v577, %v689
        %v706 = vmul.f32 %v578, %v690
        %v707 = vmul.f32 %v579, %v691
        %v708 = vmul.f32 %v580, %v692
        %v709 = vmul.f32 %v581, %v693
        %v710 = vmul.f32 %v582, %v694
        %v711 = vmul.f32 %v583, %v695
        %v712 = vmul.f32 %v584, %v696
        %v713 = vmul.f32 %v585, %v697
        %v714 = vld [vmem:[%s3] sm:$0x1]
        %v716 = vlaneseq
        %v717 = vshrl.u32 %v716, 7
        %v718 = vsub.s32 0, %v717
        %v719 = vrot.slane %v714, %v718
        %v721 = vmul.f32 %v698, %v719
        %v722 = vmul.f32 %v699, %v719
        %v723 = vmul.f32 %v700, %v719
        %v724 = vmul.f32 %v701, %v719
        %v725 = vmul.f32 %v702, %v719
        %v726 = vmul.f32 %v703, %v719
        %v727 = vmul.f32 %v704, %v719
        %v728 = vmul.f32 %v705, %v719
        %v729 = vmul.f32 %v706, %v719
        %v730 = vmul.f32 %v707, %v719
        %v731 = vmul.f32 %v708, %v719
        %v732 = vmul.f32 %v709, %v719
        %v733 = vmul.f32 %v710, %v719
        %v734 = vmul.f32 %v711, %v719
        %v735 = vmul.f32 %v712, %v719
        %v736 = vmul.f32 %v713, %v719
        %v737 = vld [vmem:[%s4] sm:$0x1]
        %v739 = vlaneseq
        %v740 = vshrl.u32 %v739, 7
        %v741 = vsub.s32 0, %v740
        %v742 = vrot.slane %v737, %v741
        %v744 = vadd.f32 %v721, %v742
        %v745 = vadd.f32 %v722, %v742
        %v746 = vadd.f32 %v723, %v742
        %v747 = vadd.f32 %v724, %v742
        %v748 = vadd.f32 %v725, %v742
        %v749 = vadd.f32 %v726, %v742
        %v750 = vadd.f32 %v727, %v742
        %v751 = vadd.f32 %v728, %v742
        %v752 = vadd.f32 %v729, %v742
        %v753 = vadd.f32 %v730, %v742
        %v754 = vadd.f32 %v731, %v742
        %v755 = vadd.f32 %v732, %v742
        %v756 = vadd.f32 %v733, %v742
        %v757 = vadd.f32 %v734, %v742
        %v758 = vadd.f32 %v735, %v742
        %v759 = vadd.f32 %v736, %v742
        %v760 = vsel %vm505, %v744, -1e+30
        %v761 = vsel %vm505, %v745, -1e+30
        %v762 = vsel %vm505, %v746, -1e+30
        %v763 = vsel %vm505, %v747, -1e+30
        %v764 = vsel %vm505, %v748, -1e+30
        %v765 = vsel %vm505, %v749, -1e+30
        %v766 = vsel %vm505, %v750, -1e+30
        %v767 = vsel %vm505, %v751, -1e+30
        %v768 = vsel %vm505, %v752, -1e+30
        %v769 = vsel %vm505, %v753, -1e+30
        %v770 = vsel %vm505, %v754, -1e+30
        %v771 = vsel %vm505, %v755, -1e+30
        %v772 = vsel %vm505, %v756, -1e+30
        %v773 = vsel %vm505, %v757, -1e+30
        %v774 = vsel %vm505, %v758, -1e+30
        %v775 = vsel %vm505, %v759, -1e+30
        %776 = vmax.xlane.f32.xlu0 %v760
        %v777 = vpop.xlane.xlu0 %776
        %778 = vmax.xlane.f32.xlu0 %v761
        %v779 = vpop.xlane.xlu0 %778
        %780 = vmax.xlane.f32.xlu0 %v762
        %v781 = vpop.xlane.xlu0 %780
        %782 = vmax.xlane.f32.xlu0 %v763
        %v783 = vpop.xlane.xlu0 %782
        %784 = vmax.xlane.f32.xlu0 %v764
        %v785 = vpop.xlane.xlu0 %784
        %786 = vmax.xlane.f32.xlu0 %v765
        %v787 = vpop.xlane.xlu0 %786
        %788 = vmax.xlane.f32.xlu0 %v766
        %v789 = vpop.xlane.xlu0 %788
        %790 = vmax.xlane.f32.xlu0 %v767
        %v791 = vpop.xlane.xlu0 %790
        %792 = vmax.xlane.f32.xlu0 %v768
        %v793 = vpop.xlane.xlu0 %792
        %794 = vmax.xlane.f32.xlu0 %v769
        %v795 = vpop.xlane.xlu0 %794
        %796 = vmax.xlane.f32.xlu0 %v770
        %v797 = vpop.xlane.xlu0 %796
        %798 = vmax.xlane.f32.xlu0 %v771
        %v799 = vpop.xlane.xlu0 %798
        %800 = vmax.xlane.f32.xlu0 %v772
        %v801 = vpop.xlane.xlu0 %800
        %802 = vmax.xlane.f32.xlu0 %v773
        %v803 = vpop.xlane.xlu0 %802
        %804 = vmax.xlane.f32.xlu0 %v774
        %v805 = vpop.xlane.xlu0 %804
        %806 = vmax.xlane.f32.xlu0 %v775
        %v807 = vpop.xlane.xlu0 %806
        %v808 = vsub.f32 %v760, %v777
        %v809 = vsub.f32 %v761, %v779
        %v810 = vsub.f32 %v762, %v781
        %v811 = vsub.f32 %v763, %v783
        %v812 = vsub.f32 %v764, %v785
        %v813 = vsub.f32 %v765, %v787
        %v814 = vsub.f32 %v766, %v789
        %v815 = vsub.f32 %v767, %v791
        %v816 = vsub.f32 %v768, %v793
        %v817 = vsub.f32 %v769, %v795
        %v818 = vsub.f32 %v770, %v797
        %v819 = vsub.f32 %v771, %v799
        %v820 = vsub.f32 %v772, %v801
        %v821 = vsub.f32 %v773, %v803
        %v822 = vsub.f32 %v774, %v805
        %v823 = vsub.f32 %v775, %v807
        %v824 = vmul.f32 %v808, 1.442695
        %v825 = vpow.pop %v824
        %v826 = vmul.f32 %v809, 1.442695
        %v827 = vpow.pop %v826
        %v828 = vmul.f32 %v810, 1.442695
        %v829 = vpow.pop %v828
        %v830 = vmul.f32 %v811, 1.442695
        %v831 = vpow.pop %v830
        %v832 = vmul.f32 %v812, 1.442695
        %v833 = vpow.pop %v832
        %v834 = vmul.f32 %v813, 1.442695
        %v835 = vpow.pop %v834
        %v836 = vmul.f32 %v814, 1.442695
        %v837 = vpow.pop %v836
        %v838 = vmul.f32 %v815, 1.442695
        %v839 = vpow.pop %v838
        %v840 = vmul.f32 %v816, 1.442695
        %v841 = vpow.pop %v840
        %v842 = vmul.f32 %v817, 1.442695
        %v843 = vpow.pop %v842
        %v844 = vmul.f32 %v818, 1.442695
        %v845 = vpow.pop %v844
        %v846 = vmul.f32 %v819, 1.442695
        %v847 = vpow.pop %v846
        %v848 = vmul.f32 %v820, 1.442695
        %v849 = vpow.pop %v848
        %v850 = vmul.f32 %v821, 1.442695
        %v851 = vpow.pop %v850
        %v852 = vmul.f32 %v822, 1.442695
        %v853 = vpow.pop %v852
        %v854 = vmul.f32 %v823, 1.442695
        %v855 = vpow.pop %v854
        %856 = vadd.xlane.f32.xlu0 %v825
        %v857 = vpop.xlane.xlu0 %856
        %858 = vadd.xlane.f32.xlu0 %v827
        %v859 = vpop.xlane.xlu0 %858
        %860 = vadd.xlane.f32.xlu0 %v829
        %v861 = vpop.xlane.xlu0 %860
        %862 = vadd.xlane.f32.xlu0 %v831
        %v863 = vpop.xlane.xlu0 %862
        %864 = vadd.xlane.f32.xlu0 %v833
        %v865 = vpop.xlane.xlu0 %864
        %866 = vadd.xlane.f32.xlu0 %v835
        %v867 = vpop.xlane.xlu0 %866
        %868 = vadd.xlane.f32.xlu0 %v837
        %v869 = vpop.xlane.xlu0 %868
        %870 = vadd.xlane.f32.xlu0 %v839
        %v871 = vpop.xlane.xlu0 %870
        %872 = vadd.xlane.f32.xlu0 %v841
        %v873 = vpop.xlane.xlu0 %872
        %874 = vadd.xlane.f32.xlu0 %v843
        %v875 = vpop.xlane.xlu0 %874
        %876 = vadd.xlane.f32.xlu0 %v845
        %v877 = vpop.xlane.xlu0 %876
        %878 = vadd.xlane.f32.xlu0 %v847
        %v879 = vpop.xlane.xlu0 %878
        %880 = vadd.xlane.f32.xlu0 %v849
        %v881 = vpop.xlane.xlu0 %880
        %882 = vadd.xlane.f32.xlu0 %v851
        %v883 = vpop.xlane.xlu0 %882
        %884 = vadd.xlane.f32.xlu0 %v853
        %v885 = vpop.xlane.xlu0 %884
        %886 = vadd.xlane.f32.xlu0 %v855
        %v887 = vpop.xlane.xlu0 %886
        %v888 = vrcp.pop %v857
        %v889 = vrcp.pop %v859
        %v890 = vrcp.pop %v861
        %v891 = vrcp.pop %v863
        %v892 = vrcp.pop %v865
        %v893 = vrcp.pop %v867
        %v894 = vrcp.pop %v869
        %v895 = vrcp.pop %v871
        %v896 = vrcp.pop %v873
        %v897 = vrcp.pop %v875
        %v898 = vrcp.pop %v877
        %v899 = vrcp.pop %v879
        %v900 = vrcp.pop %v881
        %v901 = vrcp.pop %v883
        %v902 = vrcp.pop %v885
        %v903 = vrcp.pop %v887
        %v904 = vmul.f32 %v825, %v888
        %v905 = vmul.f32 %v827, %v889
        %v906 = vmul.f32 %v829, %v890
        %v907 = vmul.f32 %v831, %v891
        %v908 = vmul.f32 %v833, %v892
        %v909 = vmul.f32 %v835, %v893
        %v910 = vmul.f32 %v837, %v894
        %v911 = vmul.f32 %v839, %v895
        %v912 = vmul.f32 %v841, %v896
        %v913 = vmul.f32 %v843, %v897
        %v914 = vmul.f32 %v845, %v898
        %v915 = vmul.f32 %v847, %v899
        %v916 = vmul.f32 %v849, %v900
        %v917 = vmul.f32 %v851, %v901
        %v918 = vmul.f32 %v853, %v902
        %v919 = vmul.f32 %v855, %v903
        %v920 = vpack.c.bf16 %v905, %v904
        %v921 = vpack.c.bf16 %v907, %v906
        %v922 = vpack.c.bf16 %v909, %v908
        %v923 = vpack.c.bf16 %v911, %v910
        %v924 = vpack.c.bf16 %v913, %v912
        %v925 = vpack.c.bf16 %v915, %v914
        %v926 = vpack.c.bf16 %v917, %v916
        %v927 = vpack.c.bf16 %v919, %v918
        %v936 = vunpack.c.l.b16 %v920
        %v937 = vunpack.c.h.b16 %v920
        %v938 = vunpack.c.l.b16 %v921
        %v939 = vunpack.c.h.b16 %v921
        %v940 = vunpack.c.l.b16 %v922
        %v941 = vunpack.c.h.b16 %v922
        %v942 = vunpack.c.l.b16 %v923
        %v943 = vunpack.c.h.b16 %v923
        %v944 = vunpack.c.l.b16 %v924
        %v945 = vunpack.c.h.b16 %v924
        %v946 = vunpack.c.l.b16 %v925
        %v947 = vunpack.c.h.b16 %v925
        %v948 = vunpack.c.l.b16 %v926
        %v949 = vunpack.c.h.b16 %v926
        %v950 = vunpack.c.l.b16 %v927
        %v951 = vunpack.c.h.b16 %v927
        %v952 = vpack.c.b16 %v936, %v936
        %v953 = vpack.c.b16 %v937, %v937
        %v954 = vpack.c.b16 %v938, %v938
        %v955 = vpack.c.b16 %v939, %v939
        %v956 = vpack.c.b16 %v940, %v940
        %v957 = vpack.c.b16 %v941, %v941
        %v958 = vpack.c.b16 %v942, %v942
        %v959 = vpack.c.b16 %v943, %v943
        %v960 = vpack.c.b16 %v944, %v944
        %v961 = vpack.c.b16 %v945, %v945
        %v962 = vpack.c.b16 %v946, %v946
        %v963 = vpack.c.b16 %v947, %v947
        %v964 = vpack.c.b16 %v948, %v948
        %v965 = vpack.c.b16 %v949, %v949
        %v966 = vpack.c.b16 %v950, %v950
        %v967 = vpack.c.b16 %v951, %v951
        %984 = vst [vmem:[%s220] sm:$0xf] %v952
        %985 = vst [vmem:[%s220 + $0x4] sm:$0xf] %v953
        %986 = vst [vmem:[%s220 + $0x8] sm:$0xf] %v954
        %987 = vst [vmem:[%s220 + $0xc] sm:$0xf] %v955
        %988 = vst [vmem:[%s220 + $0x10] sm:$0xf] %v956
        %989 = vst [vmem:[%s220 + $0x14] sm:$0xf] %v957
        %990 = vst [vmem:[%s220 + $0x18] sm:$0xf] %v958
        %991 = vst [vmem:[%s220 + $0x1c] sm:$0xf] %v959
        %992 = vst [vmem:[%s220 + $0x20] sm:$0xf] %v960
        %993 = vst [vmem:[%s220 + $0x24] sm:$0xf] %v961
        %994 = vst [vmem:[%s220 + $0x28] sm:$0xf] %v962
        %995 = vst [vmem:[%s220 + $0x2c] sm:$0xf] %v963
        %996 = vst [vmem:[%s220 + $0x30] sm:$0xf] %v964
        %997 = vst [vmem:[%s220 + $0x34] sm:$0xf] %v965
        %998 = vst [vmem:[%s220 + $0x38] sm:$0xf] %v966
        %999 = vst [vmem:[%s220 + $0x3c] sm:$0xf] %v967
        %s1000 = sand.u32 %s137, 1
        %s1001 = scalar_lea.sflag [#allocation3], %s1000
        %s1002 = sand.u32 %s137, 1
        %s1003 = smul.addr %s1002, 64
        %s1004 = scalar_lea.vmem [#allocation2], %s1003
        // Predicated region
        $region41: #{visual_tokenizer_forward.1} parent=39 // pred_check
          %p1005 = pneg %p147
        $region42: #{visual_tokenizer_forward.1} parent=39 // pred_check_branch
          %1007 = sbr.rel (%p1005) target = $region44
        $region43: #{visual_tokenizer_forward.1} parent=39 // pred_region
          %s1008 = smul.u32 16, %s19
          %s1010 = ssub.s32 1024, 1024
          %1011 = vsyncadd %s1001, %s1010
          %s1012 = smul.addr %s1008, 64
          %s1013 = scalar_lea.hbm %s5, %s1012
          %s1014 = sshll.u32 %s1004, 4
          %s1015 = int_to_ptr.vmem [resolvable:$true] %s1014
          %1020 = dma.vmem_to_hbm [thread:$0]  %s1015, 1024, %s1013, %s1001, 64, 64, 4
        $region44: #{visual_tokenizer_forward.1} parent=39 // pred_fallthru
          _
      $region40: #{visual_tokenizer_forward.1} parent=5 // pred_fallthru
        _
      %p1021 = scmp.le.s32.totalorder 2, %s14
      // Predicated region
      $region45: #{visual_tokenizer_forward.1} parent=5 // pred_check
        %p1022 = pneg %p1021
      $region46: #{visual_tokenizer_forward.1} parent=5 // pred_check_branch
        %1024 = sbr.rel (%p1022) target = $region48
      $region47: #{visual_tokenizer_forward.1} parent=5 // pred_region
        %s1025 = ssub.s32 %s14, 2
        // Predicated region
        $region49: #{visual_tokenizer_forward.1} parent=47 // pred_check
          %p1026 = pneg %p153
        $region50: #{visual_tokenizer_forward.1} parent=47 // pred_check_branch
          %1028 = sbr.rel (%p1026) target = $region52
        $region51: #{visual_tokenizer_forward.1} parent=47 // pred_region
          %s1029 = sand.u32 %s138, 1
          %s1030 = scalar_lea.sflag [#allocation3], %s1029
          %s1031 = sand.u32 %s138, 1
          %s1032 = smul.addr %s1031, 64
          %s1033 = scalar_lea.vmem [#allocation2], %s1032
          %1034 = dma.done %s1030, 1024
        $region52: #{visual_tokenizer_forward.1} parent=47 // pred_fallthru
          _
      $region48: #{visual_tokenizer_forward.1} parent=5 // pred_fallthru
        _
    $region6: #{visual_tokenizer_forward.1} parent=1 // loop_footer
      %s18 = sadd.s32 1, %s14
    $region7: #{visual_tokenizer_forward.1} parent=1 // loop_footer_branch
      %13 = sbr.rel target = $region3
    $region8: #{visual_tokenizer_forward.1} parent=1 // loop_exit
      _
    %1035 = vsyncpa [#allocation3], 1
    %s1036 = scalar_lea.sflag [#allocation3], 1
    %1037 = vsyncpa %s1036, 1

</llo_original>
